<compile_context>
chip_gen: v6e
topology: v6e:2x2x1
jax: 0.10.0
libtpu: 0.0.40
codegen_flags: <defaults>
</compile_context>

<pallas_src>
import functools

import jax
import jax.numpy as jnp
from jax.experimental import pallas as pl
from jax.experimental.pallas import tpu as pltpu

LANES = 128
DEFAULT_SMOOTH = 1e-6


def _round_up(x, m):
    return ((x + m - 1) // m) * m


def _chip_config():
    """(preferred_tile_rows, nsplit) based on the local TPU generation."""
    try:
        kind = jax.devices()[0].device_kind.lower()
    except Exception:
        kind = ""
    if "v7" in kind or "tpu7" in kind:
        # v7x: 2 TensorCores/chip, 32 MiB default scoped VMEM.
        return 4096, 2
    if "v6" in kind:
        # v6e: single TC, 32 MiB default scoped VMEM -> bigger tiles are free.
        return 4096, 1
    # v5e / unknown: 16 MiB default scoped VMEM; 1 MiB blocks are ~roofline.
    return 2048, 1


def _dice_sums_kernel(p_ref, t_ref, out_ref, acc_pt_ref, acc_s_ref, *,
                      tiles_per_split, tile_rows, valid_rows, needs_mask):
    """Accumulates sum(p*t) and sum(p+t) over row tiles (one split per core)."""
    i = pl.program_id(1)  # tile index within this split (reduction axis, last)

    @pl.when(i == 0)
    def _():
        acc_pt_ref[...] = jnp.zeros_like(acc_pt_ref)
        acc_s_ref[...] = jnp.zeros_like(acc_s_ref)

    p = p_ref[...].astype(jnp.float32)
    t = t_ref[...].astype(jnp.float32)

    def accumulate(pv, tv):
        # Leading-axis tree sum into (8, LANES) accumulators. The reshape only
        # splits the leading dim (free view, no (8,128) boundary crossing) and
        # the axis-0 reduce is pure vreg-wise VALU adds (no XLU), so per-step
        # accumulator load/store traffic is near zero.
        acc_pt_ref[...] += (pv * tv).reshape(tile_rows // 8, 8, LANES).sum(axis=0)
        acc_s_ref[...] += (pv + tv).reshape(tile_rows // 8, 8, LANES).sum(axis=0)

    if needs_mask:
        # Intended global tile index. The index_map clamps the actual DMA to
        # stay in bounds, so ragged / clamped-duplicate tiles must be zeroed
        # by the *intended* row index. Only those tiles pay the mask cost.
        g = pl.program_id(0) * tiles_per_split + i
        tile_is_ragged = (g + 1) * tile_rows > valid_rows

        @pl.when(tile_is_ragged)
        def _():
            row_ids = g * tile_rows + jax.lax.broadcasted_iota(
                jnp.int32, (tile_rows, LANES), 0)
            mask = row_ids < valid_rows
            accumulate(jnp.where(mask, p, 0.0), jnp.where(mask, t, 0.0))

        @pl.when(jnp.logical_not(tile_is_ragged))
        def _():
            accumulate(p, t)
    else:
        accumulate(p, t)

    # Write this split's raw (8, LANES) partial sums once; the tiny cross-lane
    # reduction happens in the wrapper.
    @pl.when(i == tiles_per_split - 1)
    def _():
        out_ref[0, 0] = acc_pt_ref[...]
        out_ref[0, 1] = acc_s_ref[...]


def dice_loss(logits, targets, smooth=DEFAULT_SMOOTH):
    assert logits.shape == targets.shape
    n = logits.size

    # Flatten without copying / padding / upcasting.
    p_flat = jnp.ravel(logits)
    t_flat = jnp.ravel(targets)

    main_n = (n // LANES) * LANES
    rows = main_n // LANES

    inter = jnp.float32(0.0)  # sum(p * t)
    total = jnp.float32(0.0)  # sum(p) + sum(t)

    if rows > 0:
        p2 = p_flat[:main_n].reshape(rows, LANES)
        t2 = t_flat[:main_n].reshape(rows, LANES)

        pref_tile_rows, pref_nsplit = _chip_config()
        tile_rows = min(pref_tile_rows, _round_up(rows, 16))
        total_tiles = pl.cdiv(rows, tile_rows)
        nsplit = min(pref_nsplit, total_tiles)
        tiles_per_split = pl.cdiv(total_tiles, nsplit)
        needs_mask = (rows % tile_rows != 0) or (
            nsplit * tiles_per_split != total_tiles)

        def in_map(s, i):
            g = s * tiles_per_split + i
            # Clamp so the DMA never reads past the array; masked in-kernel.
            return (jnp.minimum(g, total_tiles - 1), 0)

        kernel = functools.partial(
            _dice_sums_kernel,
            tiles_per_split=tiles_per_split,
            tile_rows=tile_rows,
            valid_rows=rows,
            needs_mask=needs_mask,
        )

        if nsplit > 1:
            # v7x: actually shard the leading split axis across TensorCores.
            dim_sems = (getattr(pltpu, "CORE_PARALLEL", "parallel"),
                        getattr(pltpu, "ARBITRARY", "arbitrary"))
        else:
            dim_sems = ("arbitrary", "arbitrary")

        sums = pl.pallas_call(
            kernel,
            out_shape=jax.ShapeDtypeStruct((nsplit, 2, 8, LANES), jnp.float32),
            grid=(nsplit, tiles_per_split),
            in_specs=[
                pl.BlockSpec((tile_rows, LANES), in_map),
                pl.BlockSpec((tile_rows, LANES), in_map),
            ],
            out_specs=pl.BlockSpec((1, 2, 8, LANES), lambda s, i: (s, 0, 0, 0)),
            scratch_shapes=[
                pltpu.VMEM((8, LANES), jnp.float32),  # partial sum of p*t
                pltpu.VMEM((8, LANES), jnp.float32),  # partial sum of p+t
            ],
            compiler_params=pltpu.CompilerParams(
                dimension_semantics=dim_sems),
        )(p2, t2)

        inter = inter + jnp.sum(sums[:, 0])
        total = total + jnp.sum(sums[:, 1])

    if main_n < n:
        # Tiny ragged lane tail (< 128 elements): plain JAX, negligible cost.
        tp = p_flat[main_n:].astype(jnp.float32)
        tt = t_flat[main_n:].astype(jnp.float32)
        inter = inter + jnp.sum(tp * tt)
        total = total + jnp.sum(tp) + jnp.sum(tt)

    smooth = jnp.float32(smooth)
    dice = (2.0 * inter + smooth) / (total + smooth)
    return 1.0 - dice


if __name__ == "__main__":
    key = jax.random.PRNGKey(0)
    k1, k2 = jax.random.split(key)

    # Small NCHW shapes: batch=2, channels=4, spatial=16x16.
    logits = jax.random.uniform(k1, (2, 4, 16, 16), dtype=jnp.float32)
    targets = (jax.random.uniform(k2, (2, 4, 16, 16)) > 0.5).astype(jnp.float32)

    out = dice_loss(logits, targets)
    jax.block_until_ready(out)

    # Reference in plain JAX (same math as the PyTorch module: raw logits).
    inter = jnp.sum(logits * targets)
    ref = 1.0 - (2.0 * inter + DEFAULT_SMOOTH) / (
        jnp.sum(logits) + jnp.sum(targets) + DEFAULT_SMOOTH)
    assert jnp.allclose(out, ref, rtol=1e-5, atol=1e-6), (out, ref)

    print("KERNEL_OK")
</pallas_src>

<mosaic_0001>
module attributes {stable_mosaic.version = 11 : i64} {
  func.func @_dice_sums_kernel(%arg0: i32, %arg1: i32, %arg2: memref<16x128xf32, #tpu.memory_space<vmem>>, %arg3: memref<16x128xf32, #tpu.memory_space<vmem>>, %arg4: memref<1x2x8x128xf32, #tpu.memory_space<vmem>>, %arg5: memref<8x128xf32, #tpu.memory_space<vmem>>, %arg6: memref<8x128xf32, #tpu.memory_space<vmem>>) attributes {dimension_semantics = [#tpu.dimension_semantics<arbitrary>, #tpu.dimension_semantics<arbitrary>], iteration_bounds = array<i64: 1, 1>, scalar_prefetch = 0 : i64, scratch_operands = 2 : i64, tpu.core_type = #tpu.core_type<tc>, window_params = [{transform_indices = @transform_0, window_bounds = array<i64: 16, 128>}, {transform_indices = @transform_1, window_bounds = array<i64: 16, 128>}, {transform_indices = @transform_2, window_bounds = array<i64: 1, 2, 8, 128>}]} {
    %c0_i32 = arith.constant 0 : i32
    %0 = arith.cmpi eq, %arg1, %c0_i32 : i32
    %1 = arith.extui %0 : i1 to i32
    %c0_i32_0 = arith.constant 0 : i32
    %2 = arith.cmpi ne, %1, %c0_i32_0 : i32
    scf.if %2 {
      %cst_15 = arith.constant 0.000000e+00 : f32
      %20 = vector.broadcast %cst_15 : f32 to vector<8x128xf32>
      %c0_16 = arith.constant 0 : index
      %c0_17 = arith.constant 0 : index
      %21 = vector.load %arg5[%c0_16, %c0_17] : memref<8x128xf32, #tpu.memory_space<vmem>>, vector<8x128xf32>
      tpu.vector_store %arg5[%c0_16, %c0_17], %20 {strides = array<i32>} : memref<8x128xf32, #tpu.memory_space<vmem>>, vector<8x128xf32>,
      %cst_18 = arith.constant 0.000000e+00 : f32
      %22 = vector.broadcast %cst_18 : f32 to vector<8x128xf32>
      %c0_19 = arith.constant 0 : index
      %c0_20 = arith.constant 0 : index
      %23 = vector.load %arg6[%c0_19, %c0_20] : memref<8x128xf32, #tpu.memory_space<vmem>>, vector<8x128xf32>
      tpu.vector_store %arg6[%c0_19, %c0_20], %22 {strides = array<i32>} : memref<8x128xf32, #tpu.memory_space<vmem>>, vector<8x128xf32>,
    } else {
    }
    %c0 = arith.constant 0 : index
    %c0_1 = arith.constant 0 : index
    %3 = vector.load %arg2[%c0, %c0_1] : memref<16x128xf32, #tpu.memory_space<vmem>>, vector<16x128xf32>
    %c0_2 = arith.constant 0 : index
    %c0_3 = arith.constant 0 : index
    %4 = vector.load %arg3[%c0_2, %c0_3] : memref<16x128xf32, #tpu.memory_space<vmem>>, vector<16x128xf32>
    %c0_4 = arith.constant 0 : index
    %c0_5 = arith.constant 0 : index
    %5 = vector.load %arg5[%c0_4, %c0_5] : memref<8x128xf32, #tpu.memory_space<vmem>>, vector<8x128xf32>
    %6 = arith.mulf %3, %4 : vector<16x128xf32>
    %7 = vector.shape_cast %6 : vector<16x128xf32> to vector<2x8x128xf32>
    %cst = arith.constant dense<0.000000e+00> : vector<8x128xf32>
    %8 = vector.multi_reduction <add>, %7, %cst [0] : vector<2x8x128xf32> to vector<8x128xf32>
    %9 = arith.addf %5, %8 : vector<8x128xf32>
    %c0_6 = arith.constant 0 : index
    %c0_7 = arith.constant 0 : index
    %10 = vector.load %arg5[%c0_6, %c0_7] : memref<8x128xf32, #tpu.memory_space<vmem>>, vector<8x128xf32>
    tpu.vector_store %arg5[%c0_6, %c0_7], %9 {strides = array<i32>} : memref<8x128xf32, #tpu.memory_space<vmem>>, vector<8x128xf32>,
    %c0_8 = arith.constant 0 : index
    %c0_9 = arith.constant 0 : index
    %11 = vector.load %arg6[%c0_8, %c0_9] : memref<8x128xf32, #tpu.memory_space<vmem>>, vector<8x128xf32>
    %12 = arith.addf %3, %4 : vector<16x128xf32>
    %13 = vector.shape_cast %12 : vector<16x128xf32> to vector<2x8x128xf32>
    %cst_10 = arith.constant dense<0.000000e+00> : vector<8x128xf32>
    %14 = vector.multi_reduction <add>, %13, %cst_10 [0] : vector<2x8x128xf32> to vector<8x128xf32>
    %15 = arith.addf %11, %14 : vector<8x128xf32>
    %c0_11 = arith.constant 0 : index
    %c0_12 = arith.constant 0 : index
    %16 = vector.load %arg6[%c0_11, %c0_12] : memref<8x128xf32, #tpu.memory_space<vmem>>, vector<8x128xf32>
    tpu.vector_store %arg6[%c0_11, %c0_12], %15 {strides = array<i32>} : memref<8x128xf32, #tpu.memory_space<vmem>>, vector<8x128xf32>,
    %c0_i32_13 = arith.constant 0 : i32
    %17 = arith.cmpi eq, %arg1, %c0_i32_13 : i32
    %18 = arith.extui %17 : i1 to i32
    %c0_i32_14 = arith.constant 0 : i32
    %19 = arith.cmpi ne, %18, %c0_i32_14 : i32
    scf.if %19 {
      %c0_15 = arith.constant 0 : index
      %c0_16 = arith.constant 0 : index
      %20 = vector.load %arg5[%c0_15, %c0_16] : memref<8x128xf32, #tpu.memory_space<vmem>>, vector<8x128xf32>
      %c0_17 = arith.constant 0 : index
      %c0_18 = arith.constant 0 : index
      %c0_19 = arith.constant 0 : index
      %c0_20 = arith.constant 0 : index
      %21 = vector.load %arg4[%c0_17, %c0_18, %c0_19, %c0_20] : memref<1x2x8x128xf32, #tpu.memory_space<vmem>>, vector<1x1x8x128xf32>
      %22 = vector.shape_cast %21 : vector<1x1x8x128xf32> to vector<8x128xf32>
      %23 = vector.shape_cast %20 : vector<8x128xf32> to vector<1x1x8x128xf32>
      tpu.vector_store %arg4[%c0_17, %c0_18, %c0_19, %c0_20], %23 {strides = array<i32>} : memref<1x2x8x128xf32, #tpu.memory_space<vmem>>, vector<1x1x8x128xf32>,
      %c0_21 = arith.constant 0 : index
      %c0_22 = arith.constant 0 : index
      %24 = vector.load %arg6[%c0_21, %c0_22] : memref<8x128xf32, #tpu.memory_space<vmem>>, vector<8x128xf32>
      %c0_23 = arith.constant 0 : index
      %c1 = arith.constant 1 : index
      %c0_24 = arith.constant 0 : index
      %c0_25 = arith.constant 0 : index
      %25 = vector.load %arg4[%c0_23, %c1, %c0_24, %c0_25] : memref<1x2x8x128xf32, #tpu.memory_space<vmem>>, vector<1x1x8x128xf32>
      %26 = vector.shape_cast %25 : vector<1x1x8x128xf32> to vector<8x128xf32>
      %27 = vector.shape_cast %24 : vector<8x128xf32> to vector<1x1x8x128xf32>
      tpu.vector_store %arg4[%c0_23, %c1, %c0_24, %c0_25], %27 {strides = array<i32>} : memref<1x2x8x128xf32, #tpu.memory_space<vmem>>, vector<1x1x8x128xf32>,
    } else {
    }
    return
  }
  func.func @transform_0(%arg0: i32, %arg1: i32) -> (i32, i32) {
    %c1_i32 = arith.constant 1 : i32
    %0 = arith.muli %arg0, %c1_i32 : i32
    %1 = arith.addi %0, %arg1 : i32
    %c0_i32 = arith.constant 0 : i32
    %2 = arith.minsi %1, %c0_i32 : i32
    %c0_i32_0 = arith.constant 0 : i32
    %c0_i32_1 = arith.constant 0 : i32
    return %2, %c0_i32_0 : i32, i32
  }
  func.func @transform_1(%arg0: i32, %arg1: i32) -> (i32, i32) {
    %c1_i32 = arith.constant 1 : i32
    %0 = arith.muli %arg0, %c1_i32 : i32
    %1 = arith.addi %0, %arg1 : i32
    %c0_i32 = arith.constant 0 : i32
    %2 = arith.minsi %1, %c0_i32 : i32
    %c0_i32_0 = arith.constant 0 : i32
    %c0_i32_1 = arith.constant 0 : i32
    return %2, %c0_i32_0 : i32, i32
  }
  func.func @transform_2(%arg0: i32, %arg1: i32) -> (i32, i32, i32, i32) {
    %c0_i32 = arith.constant 0 : i32
    %c0_i32_0 = arith.constant 0 : i32
    %c0_i32_1 = arith.constant 0 : i32
    %c0_i32_2 = arith.constant 0 : i32
    return %arg0, %c0_i32, %c0_i32_0, %c0_i32_1 : i32, i32, i32, i32
  }
}

</mosaic_0001>

<llo_original>
// kernel: tpu_custom_call.1
$region0: #{tpu_custom_call.1}
  #allocation0 [shape = 'u32[]', space=smem, size = 0x4, offset = 0x4, fixed_abs, tag = 'smem constant byte address 0x4 - core index']
  #allocation1 [shape = 'u32[144,128]{1,0:T(1,128)}', space=vmem, size = 0x12000, scoped, tag = 'internal scratch']
  #allocation2 [shape = 'f32[8,128]{1,0:T(8,128)}', space=vmem, size = 0x1000, scoped, tag = 'scratch operand']
  #allocation3 [shape = 'f32[8,128]{1,0:T(8,128)}', space=vmem, size = 0x1000, scoped, tag = 'scratch operand']
  %s0 = inlined_call_operand.hbm [shape: f32[16,128], index: 0, kind: input, shape index: {}]
  %s1 = inlined_call_operand.hbm [shape: f32[16,128], index: 1, kind: input, shape index: {}]
  %s2 = inlined_call_operand.hbm [shape: f32[1,2,8,128], index: 2, kind: output, shape index: {}]
  %s3 = sld [smem:[#allocation0]]
  $region34: #{tpu_custom_call.1} parent=0
    _
  %s5 = ssub.s32 1, %s3
  %s6 = scalar_select 0, %s5, %s3
  $region1: #{tpu_custom_call.1} parent=0
    #allocation4 [shape = 'u8[8192]{0}', space=vmem, size = 0x2000, scoped, tag = 'input window, operand 0, single buffered']
    #allocation5 [shape = 's32[1]{0}', space=sflag, size = 0x4, scoped, tag = 'scoped memory for tpu_custom_call.1']
    #allocation6 [shape = 's32[1]{0}', space=sflag, size = 0x4, scoped, tag = 'scoped memory for tpu_custom_call.1']
    #allocation7 [shape = 'u8[8192]{0}', space=vmem, size = 0x2000, scoped, tag = 'input window, operand 1, single buffered']
    #allocation8 [shape = 's32[1]{0}', space=sflag, size = 0x4, scoped, tag = 'scoped memory for tpu_custom_call.1']
    #allocation9 [shape = 'u8[8192]{0}', space=vmem, size = 0x2000, scoped, tag = 'output window, operand 0, single buffered']
    %7 = vsyncpa [#allocation5], 0
    %8 = vsyncpa [#allocation8], 0
    %9 = vsyncpa [#allocation6], 0
    // Predicated region
    $region2: #{tpu_custom_call.1} parent=1 // pred_check
      _
    $region3: #{tpu_custom_call.1} parent=1 // pred_check_branch
      %11 = sbr.rel (0) target = $region5
    $region4: #{tpu_custom_call.1} parent=1 // pred_region
      %s12 = sadd.s32 0, 0
      %p13 = scmp.lt.s32.totalorder %s12, 0
      %s14 = scalar_select %p13, %s12, 0
      %s15 = smul.u32 2, %s14
      %s17 = ssub.s32 256, 256
      %18 = vsyncadd [#allocation5], %s17
      %s19 = smul.addr %s15, 128
      %s20 = scalar_lea.hbm %s0, %s19
      %s21 = sshll.u32 [#allocation4], 4
      %s22 = int_to_ptr.vmem [resolvable:$true] %s21
      %27 = dma.hbm_to_vmem [thread:$0]  %s20, 256, %s22, [#allocation5], 128, 128, 8
    $region5: #{tpu_custom_call.1} parent=1 // pred_fallthru
      _
    // Predicated region
    $region6: #{tpu_custom_call.1} parent=1 // pred_check
      _
    $region7: #{tpu_custom_call.1} parent=1 // pred_check_branch
      %29 = sbr.rel (0) target = $region9
    $region8: #{tpu_custom_call.1} parent=1 // pred_region
      %s30 = sadd.s32 0, 0
      %p31 = scmp.lt.s32.totalorder %s30, 0
      %s32 = scalar_select %p31, %s30, 0
      %s33 = smul.u32 2, %s32
      %s35 = ssub.s32 256, 256
      %36 = vsyncadd [#allocation8], %s35
      %s37 = smul.addr %s33, 128
      %s38 = scalar_lea.hbm %s1, %s37
      %s39 = sshll.u32 [#allocation7], 4
      %s40 = int_to_ptr.vmem [resolvable:$true] %s39
      %45 = dma.hbm_to_vmem [thread:$0]  %s38, 256, %s40, [#allocation8], 128, 128, 8
    $region9: #{tpu_custom_call.1} parent=1 // pred_fallthru
      _
    // Predicated region
    $region10: #{tpu_custom_call.1} parent=1 // pred_check
      _
    $region11: #{tpu_custom_call.1} parent=1 // pred_check_branch
      %47 = sbr.rel (0) target = $region13
    $region12: #{tpu_custom_call.1} parent=1 // pred_region
      %48 = dma.done [#allocation5], 256
    $region13: #{tpu_custom_call.1} parent=1 // pred_fallthru
      _
    // Predicated region
    $region14: #{tpu_custom_call.1} parent=1 // pred_check
      _
    $region15: #{tpu_custom_call.1} parent=1 // pred_check_branch
      %50 = sbr.rel (0) target = $region17
    $region16: #{tpu_custom_call.1} parent=1 // pred_region
      %51 = dma.done [#allocation8], 256
    $region17: #{tpu_custom_call.1} parent=1 // pred_fallthru
      _
    %s52 = sadd.s32 0, 0
    %p53 = scmp.lt.s32.totalorder %s52, 0
    %s54 = scalar_select %p53, %s52, 0
    %s55 = smul.u32 2, %s54
    %s56 = sadd.s32 0, 0
    %p57 = scmp.lt.s32.totalorder %s56, 0
    %s58 = scalar_select %p57, %s56, 0
    %s59 = smul.u32 2, %s58
    %p60 = scmp.eq.s32.totalorder 0, 0
    // Predicated region
    $region18: #{tpu_custom_call.1} parent=1 // pred_check
      %p61 = pneg %p60
    $region19: #{tpu_custom_call.1} parent=1 // pred_check_branch
      %63 = sbr.rel (%p61) target = $region21
    $region20: #{tpu_custom_call.1} parent=1 // pred_region
      %64 = vst [vmem:[#allocation2] sm:$0xff] 0.0
      %65 = vst [vmem:[#allocation3] sm:$0xff] 0.0
    $region21: #{tpu_custom_call.1} parent=1 // pred_fallthru
      _
    %v66 = vld [vmem:[#allocation4] sm:$0xff]
    %v67 = vld [vmem:[#allocation4 + $0x8] sm:$0xff]
    %v68 = vld [vmem:[#allocation7] sm:$0xff]
    %v69 = vld [vmem:[#allocation7 + $0x8] sm:$0xff]
    %v70 = vld [vmem:[#allocation2] sm:$0xff]
    %v71 = vmul.f32 %v66, %v68
    %v72 = vmul.f32 %v67, %v69
    %v73 = vadd.f32 %v71, %v72
    %v74 = vadd.f32 %v70, %v73
    %75 = vst [vmem:[#allocation2] sm:$0xff] %v74
    %v76 = vld [vmem:[#allocation3] sm:$0xff]
    %v77 = vadd.f32 %v66, %v68
    %v78 = vadd.f32 %v67, %v69
    %v79 = vadd.f32 %v77, %v78
    %v80 = vadd.f32 %v76, %v79
    %81 = vst [vmem:[#allocation3] sm:$0xff] %v80
    // Predicated region
    $region22: #{tpu_custom_call.1} parent=1 // pred_check
      %p82 = pneg %p60
    $region23: #{tpu_custom_call.1} parent=1 // pred_check_branch
      %84 = sbr.rel (%p82) target = $region25
    $region24: #{tpu_custom_call.1} parent=1 // pred_region
      %v85 = vld [vmem:[#allocation2] sm:$0xff]
      %86 = vst [vmem:[#allocation9] sm:$0xff] %v85
      %v87 = vld [vmem:[#allocation3] sm:$0xff]
      %s88 = scalar_lea.vmem [#allocation9], 8
      %89 = vst [vmem:[%s88] sm:$0xff] %v87
    $region25: #{tpu_custom_call.1} parent=1 // pred_fallthru
      _
    // Predicated region
    $region26: #{tpu_custom_call.1} parent=1 // pred_check
      _
    $region27: #{tpu_custom_call.1} parent=1 // pred_check_branch
      %91 = sbr.rel (0) target = $region29
    $region28: #{tpu_custom_call.1} parent=1 // pred_region
      %s93 = ssub.s32 256, 256
      %94 = vsyncadd [#allocation6], %s93
      %s95 = sshll.u32 [#allocation9], 4
      %s96 = int_to_ptr.vmem [resolvable:$true] %s95
      %101 = dma.vmem_to_hbm [thread:$0]  %s96, 256, %s2, [#allocation6], 128, 128, 8
    $region29: #{tpu_custom_call.1} parent=1 // pred_fallthru
      _
    // Predicated region
    $region30: #{tpu_custom_call.1} parent=1 // pred_check
      _
    $region31: #{tpu_custom_call.1} parent=1 // pred_check_branch
      %103 = sbr.rel (0) target = $region33
    $region32: #{tpu_custom_call.1} parent=1 // pred_region
      %104 = dma.done [#allocation6], 256
    $region33: #{tpu_custom_call.1} parent=1 // pred_fallthru
      _
    %105 = vsyncpa [#allocation5], 1
    %106 = vsyncpa [#allocation8], 1
    %107 = vsyncpa [#allocation6], 1

</llo_original>
